<compile_context>
chip_gen: v7x
topology: tpu7x:2x2x1
jax: 0.10.0
libtpu: 0.0.40
codegen_flags: <defaults>
</compile_context>

<pallas_src>
import jax
import jax.numpy as jnp
import numpy as np
from jax import lax
from jax.experimental import pallas as pl
from jax.experimental.pallas import tpu as pltpu


_LANES = 128          # vreg lane width
_SUBLANES = 8         # f32 sublane count
_ROW_TILE_MAX = 1024  # max rows per batch tile
_BUF_BYTES_MAX = 4 * 1024 * 1024   # per-block-buffer VMEM budget (v7x-safe)


# ----------------------------------------------------------------------------
# Layout helpers.
# ----------------------------------------------------------------------------
def _dense_layout(batch):
    """Total rows of the lane-dense (rows, 128) layout and the batch row tile."""
    rows = -(-batch // _LANES)                      # ceil(B / 128)
    rows = -(-rows // _SUBLANES) * _SUBLANES        # multiple of 8 sublanes
    if rows > _ROW_TILE_MAX:
        # Bound padding to <= 255 extra rows instead of rounding to 1024.
        row_tile = 256
        rows = -(-rows // row_tile) * row_tile
    else:
        row_tile = rows
    # Give the "parallel" batch axis >= 2 blocks when cheap (v7x: 2 TCs/chip).
    if rows // row_tile == 1 and rows >= 16 and rows % 16 == 0:
        row_tile = rows // 2
    return rows, row_tile


def _time_chunk(T, row_tile):
    """Largest divisor of T such that one chunk buffer stays <= _BUF_BYTES_MAX."""
    buf_bytes = row_tile * _LANES * 4
    max_chunk = max(1, min(64, _BUF_BYTES_MAX // buf_bytes))
    best = 1
    for c in range(1, min(T, max_chunk) + 1):
        if T % c == 0:
            best = c
    return best


def _to_dense(x_flat, rows):
    """(B,) -> lane-dense (rows, 128) f32 slab (zero-padded only if needed)."""
    b = x_flat.shape[0]
    bp = rows * _LANES
    x = x_flat.astype(jnp.float32)
    if bp != b:
        x = jnp.pad(x, (0, bp - b))
    return x.reshape(rows, _LANES)


# ----------------------------------------------------------------------------
# Shared per-element cell math (VPU + EUP only; MXU deliberately unused).
# params are packed with the F/i gate weights PRE-MULTIPLIED by 0.5, so
# sigmoid(x) = 0.5*tanh(0.5*x)+0.5 needs no extra 0.5 scaling of the affine.
# ----------------------------------------------------------------------------
def _read_params(params_ref):
    return tuple(params_ref[i] for i in range(13))


def _cell_step(p, e, sig2, mem):
    (wf0h, wf1h, bfh,
     wi0h, wi1h, bih,
     wc0, wc1, bc,
     ww, omega, alpha, beta) = p

    F = 0.5 * jnp.tanh(wf0h * e + wf1h * mem + bfh) + 0.5
    i = 0.5 * jnp.tanh(wi0h * e + wi1h * mem + bih) + 0.5
    c_sq = jnp.tanh(wc0 * e + wc1 * mem + bc)

    # GARCH(1,1): sig2_t = omega + alpha * e^2 + beta * sig2_{t-1}
    o = omega + alpha * (e * e) + beta * sig2

    mem_new = F * mem + i * c_sq
    sig2_new = o * (1.0 + ww * jnp.tanh(mem_new))
    return sig2_new, mem_new


# ----------------------------------------------------------------------------
# Kernel 1: single cell step (API parity with the PyTorch module forward).
# Never call this in a per-timestep host loop; use garch_lstm_sequence.
# ----------------------------------------------------------------------------
def garch_cell_kernel(params_ref, e_ref, sig2_ref, mem_ref,
                      sig2_out_ref, mem_out_ref):
    p = _read_params(params_ref)
    sig2_new, mem_new = _cell_step(p, e_ref[...], sig2_ref[...], mem_ref[...])
    sig2_out_ref[...] = sig2_new
    mem_out_ref[...] = mem_new


def garch_lstm_cell(params_packed, demeaned_input, hidden_sig2, hidden_mem):
    """One GARCH-LSTM cell step.

    demeaned_input : (B,)   f32
    hidden_sig2    : (B, 1) f32
    hidden_mem     : (B, 1) f32
    returns (hidden_sig2_new (B,1), hidden_mem_new (B,1))
    """
    B = demeaned_input.shape[0]
    rows, row_tile = _dense_layout(B)
    Bp = rows * _LANES

    e2 = _to_dense(demeaned_input.reshape(B), rows)
    s2 = _to_dense(hidden_sig2.reshape(B), rows)
    m2 = _to_dense(hidden_mem.reshape(B), rows)

    blk = pl.BlockSpec((row_tile, _LANES), lambda b: (b, 0))
    sig2_o, mem_o = pl.pallas_call(
        garch_cell_kernel,
        out_shape=(jax.ShapeDtypeStruct((rows, _LANES), jnp.float32),
                   jax.ShapeDtypeStruct((rows, _LANES), jnp.float32)),
        grid=(rows // row_tile,),
        in_specs=[
            pl.BlockSpec(memory_space=pltpu.MemorySpace.SMEM),  # scalar params
            blk, blk, blk,
        ],
        out_specs=(blk, blk),
        # Donate the (padded) state buffers: sig2 -> sig2_out, mem -> mem_out.
        input_output_aliases={2: 0, 3: 1},
        compiler_params=pltpu.CompilerParams(
            dimension_semantics=("parallel",),
            vmem_limit_bytes=32 * 1024 * 1024),
    )(params_packed, e2, s2, m2)

    if Bp == B:
        return sig2_o.reshape(B, 1), mem_o.reshape(B, 1)
    sig2_new = sig2_o.reshape(Bp)[:B].reshape(B, 1)
    mem_new = mem_o.reshape(Bp)[:B].reshape(B, 1)
    return sig2_new, mem_new


# ----------------------------------------------------------------------------
# Kernel 2: fused, time-chunked T-step recurrence.
# Grid = (batch_tiles, T // T_CHUNK); state lives in VMEM scratch across the
# time axis, and each grid step runs an unrolled T_CHUNK-step inner loop with
# sig2/mem carried as loop values.
# ----------------------------------------------------------------------------
def garch_seq_kernel(params_ref, e_ref, sig20_ref, mem0_ref,
                     sig2_seq_ref, mem_seq_ref, sig2_st, mem_st):
    # Scalar params: read from SMEM once per chunk, not per timestep.
    p = _read_params(params_ref)

    # Load the initial state at the first time-chunk of each batch row-tile
    # (time is the innermost / fastest grid axis).
    @pl.when(pl.program_id(1) == 0)
    def _init():
        sig2_st[...] = sig20_ref[0]
        mem_st[...] = mem0_ref[0]

    t_chunk = e_ref.shape[0]

    def body(t, carry):
        sig2, mem = carry
        sig2_new, mem_new = _cell_step(p, e_ref[t], sig2, mem)
        sig2_seq_ref[t] = sig2_new
        mem_seq_ref[t] = mem_new
        return sig2_new, mem_new

    sig2_fin, mem_fin = lax.fori_loop(
        0, t_chunk, body, (sig2_st[...], mem_st[...]), unroll=True)

    # Persist state to scratch only at the chunk boundary.
    sig2_st[...] = sig2_fin
    mem_st[...] = mem_fin


def garch_lstm_sequence(params_packed, demeaned_inputs, hidden_sig2, hidden_mem):
    """Run the cell over T timesteps in ONE pallas_call.

    demeaned_inputs : (T, B) f32
    hidden_sig2     : (B, 1) f32  initial sigma^2
    hidden_mem      : (B, 1) f32  initial memory
    returns (sig2_seq (T,B,1), mem_seq (T,B,1))
    """
    T, B = demeaned_inputs.shape
    rows, row_tile = _dense_layout(B)
    Bp = rows * _LANES
    t_chunk = _time_chunk(T, row_tile)

    e_seq = demeaned_inputs.astype(jnp.float32)
    if Bp != B:
        e_seq = jnp.pad(e_seq, ((0, 0), (0, Bp - B)))
    e_seq = e_seq.reshape(T, rows, _LANES)

    s0 = _to_dense(hidden_sig2.reshape(B), rows).reshape(1, rows, _LANES)
    m0 = _to_dense(hidden_mem.reshape(B), rows).reshape(1, rows, _LANES)

    stream_blk = pl.BlockSpec((t_chunk, row_tile, _LANES), lambda b, t: (t, b, 0))
    state_blk = pl.BlockSpec((1, row_tile, _LANES), lambda b, t: (0, b, 0))

    sig2_seq, mem_seq = pl.pallas_call(
        garch_seq_kernel,
        out_shape=(jax.ShapeDtypeStruct((T, rows, _LANES), jnp.float32),
                   jax.ShapeDtypeStruct((T, rows, _LANES), jnp.float32)),
        grid=(rows // row_tile, T // t_chunk),
        in_specs=[
            pl.BlockSpec(memory_space=pltpu.MemorySpace.SMEM),  # scalar params
            stream_blk,   # demeaned inputs, one time-chunk per grid step
            state_blk,    # initial sigma^2
            state_blk,    # initial memory
        ],
        out_specs=(stream_blk, stream_blk),
        scratch_shapes=[pltpu.VMEM((row_tile, _LANES), jnp.float32),
                        pltpu.VMEM((row_tile, _LANES), jnp.float32)],
        compiler_params=pltpu.CompilerParams(
            dimension_semantics=("parallel", "arbitrary"),
            vmem_limit_bytes=48 * 1024 * 1024),
    )(params_packed, e_seq, s0, m0)

    if Bp == B:
        return sig2_seq.reshape(T, B, 1), mem_seq.reshape(T, B, 1)
    sig2_seq = sig2_seq.reshape(T, Bp)[:, :B].reshape(T, B, 1)
    mem_seq = mem_seq.reshape(T, Bp)[:, :B].reshape(T, B, 1)
    return sig2_seq, mem_seq


# ----------------------------------------------------------------------------
# Parameter construction / packing (matches the PyTorch __init__ shapes).
# ----------------------------------------------------------------------------
def make_params(key):
    theta = jnp.array([0.0, 0.1, 0.8], dtype=jnp.float32)   # self.THETA
    k1, k2, k3, k4 = jax.random.split(key, 4)
    wf = jax.random.uniform(k1, (3,), jnp.float32, -0.5, 0.5)  # [w_e, w_h, b]
    wi = jax.random.uniform(k2, (3,), jnp.float32, -0.5, 0.5)
    wc = jax.random.uniform(k3, (3,), jnp.float32, -0.5, 0.5)
    ww = jax.random.uniform(k4, (1,), jnp.float32, -0.5, 0.5)
    return theta, wf, wi, wc, ww


def pack_params(theta, wf, wi, wc, ww):
    """Derive (omega, alpha, beta) and pack all scalars into one SMEM vector.

    The F / i gate parameters are pre-multiplied by 0.5 so the kernel's
    sigmoid(x) = 0.5*tanh(0.5*x)+0.5 needs no extra in-kernel 0.5 scaling.
    """
    omega = jax.nn.softplus(theta[0])
    alpha = jax.nn.sigmoid(theta[1])
    beta = (1.0 - alpha) * jax.nn.sigmoid(theta[2])
    return jnp.concatenate([
        0.5 * wf, 0.5 * wi, wc, ww,
        jnp.stack([omega, alpha, beta]),
        jnp.zeros((3,), jnp.float32),           # pad to 16
    ]).astype(jnp.float32)


# ----------------------------------------------------------------------------
# Pure-JAX reference mirroring the PyTorch module exactly.
# ----------------------------------------------------------------------------
def reference_forward(theta, wf, wi, wc, ww, e, sig2, mem):
    omega = jax.nn.softplus(theta[0])
    alpha = jax.nn.sigmoid(theta[1])
    beta = (1.0 - alpha) * jax.nn.sigmoid(theta[2])
    e1 = e[:, None]                               # (B,1)
    F = jax.nn.sigmoid(wf[0] * e1 + wf[1] * mem + wf[2])
    i = jax.nn.sigmoid(wi[0] * e1 + wi[1] * mem + wi[2])
    c = jnp.tanh(wc[0] * e1 + wc[1] * mem + wc[2])
    o = omega + alpha * e1 * e1 + beta * sig2
    mem_new = F * mem + i * c
    sig2_new = o * (1.0 + ww[0] * jnp.tanh(mem_new))
    return sig2_new, mem_new


if __name__ == "__main__":
    key = jax.random.PRNGKey(0)
    kp, ke, ks, km, kt = jax.random.split(key, 5)

    B, T = 8, 16
    theta, wf, wi, wc, ww = make_params(kp)
    params_packed = pack_params(theta, wf, wi, wc, ww)

    demeaned_input = jax.random.normal(ke, (B,), jnp.float32)
    hidden_sig2 = jax.random.uniform(ks, (B, 1), jnp.float32, 0.1, 1.0)
    hidden_mem = jax.random.normal(km, (B, 1), jnp.float32)

    # --- single cell step (module forward semantics) ---
    sig2_new, mem_new = jax.jit(garch_lstm_cell)(
        params_packed, demeaned_input, hidden_sig2, hidden_mem)
    jax.block_until_ready((sig2_new, mem_new))

    sig2_ref, mem_ref = reference_forward(
        theta, wf, wi, wc, ww, demeaned_input, hidden_sig2, hidden_mem)
    np.testing.assert_allclose(np.asarray(sig2_new), np.asarray(sig2_ref),
                               rtol=3e-5, atol=1e-5)
    np.testing.assert_allclose(np.asarray(mem_new), np.asarray(mem_ref),
                               rtol=3e-5, atol=1e-5)

    # --- fused, time-chunked T-step recurrence (one pallas_call) ---
    e_seq = jax.random.normal(kt, (T, B), jnp.float32)
    sig2_seq, mem_seq = jax.jit(garch_lstm_sequence)(
        params_packed, e_seq, hidden_sig2, hidden_mem)
    jax.block_until_ready((sig2_seq, mem_seq))

    def ref_step(carry, e_t):
        s, m = carry
        s_n, m_n = reference_forward(theta, wf, wi, wc, ww, e_t, s, m)
        return (s_n, m_n), (s_n, m_n)

    _, (sig2_seq_ref, mem_seq_ref) = jax.lax.scan(
        ref_step, (hidden_sig2, hidden_mem), e_seq)
    np.testing.assert_allclose(np.asarray(sig2_seq), np.asarray(sig2_seq_ref),
                               rtol=1e-4, atol=1e-4)
    np.testing.assert_allclose(np.asarray(mem_seq), np.asarray(mem_seq_ref),
                               rtol=1e-4, atol=1e-4)

    print("KERNEL_OK")
</pallas_src>

<mosaic_0001>
module attributes {stable_mosaic.version = 11 : i64} {
  func.func @garch_cell_kernel(%arg0: i32, %arg1: memref<16xf32, #tpu.memory_space<smem>>, %arg2: memref<8x128xf32, #tpu.memory_space<vmem>>, %arg3: memref<8x128xf32, #tpu.memory_space<vmem>>, %arg4: memref<8x128xf32, #tpu.memory_space<vmem>>, %arg5: memref<8x128xf32, #tpu.memory_space<vmem>>, %arg6: memref<8x128xf32, #tpu.memory_space<vmem>>) attributes {dimension_semantics = [#tpu.dimension_semantics<parallel>], iteration_bounds = array<i64: 1>, scalar_prefetch = 0 : i64, scratch_operands = 0 : i64, tpu.core_type = #tpu.core_type<tc>, window_params = [{transform_indices = @transform_0, window_bounds = array<i64: 16>}, {transform_indices = @transform_1, window_bounds = array<i64: 8, 128>}, {transform_indices = @transform_2, window_bounds = array<i64: 8, 128>}, {transform_indices = @transform_3, window_bounds = array<i64: 8, 128>}, {transform_indices = @transform_4, window_bounds = array<i64: 8, 128>}, {transform_indices = @transform_5, window_bounds = array<i64: 8, 128>}]} {
    %c0 = arith.constant 0 : index
    %0 = memref.load %arg1[%c0] : memref<16xf32, #tpu.memory_space<smem>>
    %c1 = arith.constant 1 : index
    %1 = memref.load %arg1[%c1] : memref<16xf32, #tpu.memory_space<smem>>
    %c2 = arith.constant 2 : index
    %2 = memref.load %arg1[%c2] : memref<16xf32, #tpu.memory_space<smem>>
    %c3 = arith.constant 3 : index
    %3 = memref.load %arg1[%c3] : memref<16xf32, #tpu.memory_space<smem>>
    %c4 = arith.constant 4 : index
    %4 = memref.load %arg1[%c4] : memref<16xf32, #tpu.memory_space<smem>>
    %c5 = arith.constant 5 : index
    %5 = memref.load %arg1[%c5] : memref<16xf32, #tpu.memory_space<smem>>
    %c6 = arith.constant 6 : index
    %6 = memref.load %arg1[%c6] : memref<16xf32, #tpu.memory_space<smem>>
    %c7 = arith.constant 7 : index
    %7 = memref.load %arg1[%c7] : memref<16xf32, #tpu.memory_space<smem>>
    %c8 = arith.constant 8 : index
    %8 = memref.load %arg1[%c8] : memref<16xf32, #tpu.memory_space<smem>>
    %c9 = arith.constant 9 : index
    %9 = memref.load %arg1[%c9] : memref<16xf32, #tpu.memory_space<smem>>
    %c10 = arith.constant 10 : index
    %10 = memref.load %arg1[%c10] : memref<16xf32, #tpu.memory_space<smem>>
    %c11 = arith.constant 11 : index
    %11 = memref.load %arg1[%c11] : memref<16xf32, #tpu.memory_space<smem>>
    %c12 = arith.constant 12 : index
    %12 = memref.load %arg1[%c12] : memref<16xf32, #tpu.memory_space<smem>>
    %c0_0 = arith.constant 0 : index
    %c0_1 = arith.constant 0 : index
    %13 = vector.load %arg2[%c0_0, %c0_1] : memref<8x128xf32, #tpu.memory_space<vmem>>, vector<8x128xf32>
    %c0_2 = arith.constant 0 : index
    %c0_3 = arith.constant 0 : index
    %14 = vector.load %arg3[%c0_2, %c0_3] : memref<8x128xf32, #tpu.memory_space<vmem>>, vector<8x128xf32>
    %c0_4 = arith.constant 0 : index
    %c0_5 = arith.constant 0 : index
    %15 = vector.load %arg4[%c0_4, %c0_5] : memref<8x128xf32, #tpu.memory_space<vmem>>, vector<8x128xf32>
    %16 = vector.broadcast %0 : f32 to vector<8x128xf32>
    %17 = arith.mulf %16, %13 : vector<8x128xf32>
    %18 = vector.broadcast %1 : f32 to vector<8x128xf32>
    %19 = arith.mulf %18, %15 : vector<8x128xf32>
    %20 = arith.addf %17, %19 : vector<8x128xf32>
    %21 = vector.broadcast %2 : f32 to vector<8x128xf32>
    %22 = arith.addf %20, %21 : vector<8x128xf32>
    %23 = math.tanh %22 : vector<8x128xf32>
    %cst = arith.constant 5.000000e-01 : f32
    %24 = vector.broadcast %cst : f32 to vector<8x128xf32>
    %25 = arith.mulf %24, %23 : vector<8x128xf32>
    %cst_6 = arith.constant 5.000000e-01 : f32
    %26 = vector.broadcast %cst_6 : f32 to vector<8x128xf32>
    %27 = arith.addf %25, %26 : vector<8x128xf32>
    %28 = vector.broadcast %3 : f32 to vector<8x128xf32>
    %29 = arith.mulf %28, %13 : vector<8x128xf32>
    %30 = vector.broadcast %4 : f32 to vector<8x128xf32>
    %31 = arith.mulf %30, %15 : vector<8x128xf32>
    %32 = arith.addf %29, %31 : vector<8x128xf32>
    %33 = vector.broadcast %5 : f32 to vector<8x128xf32>
    %34 = arith.addf %32, %33 : vector<8x128xf32>
    %35 = math.tanh %34 : vector<8x128xf32>
    %cst_7 = arith.constant 5.000000e-01 : f32
    %36 = vector.broadcast %cst_7 : f32 to vector<8x128xf32>
    %37 = arith.mulf %36, %35 : vector<8x128xf32>
    %cst_8 = arith.constant 5.000000e-01 : f32
    %38 = vector.broadcast %cst_8 : f32 to vector<8x128xf32>
    %39 = arith.addf %37, %38 : vector<8x128xf32>
    %40 = vector.broadcast %6 : f32 to vector<8x128xf32>
    %41 = arith.mulf %40, %13 : vector<8x128xf32>
    %42 = vector.broadcast %7 : f32 to vector<8x128xf32>
    %43 = arith.mulf %42, %15 : vector<8x128xf32>
    %44 = arith.addf %41, %43 : vector<8x128xf32>
    %45 = vector.broadcast %8 : f32 to vector<8x128xf32>
    %46 = arith.addf %44, %45 : vector<8x128xf32>
    %47 = math.tanh %46 : vector<8x128xf32>
    %48 = arith.mulf %13, %13 : vector<8x128xf32>
    %49 = vector.broadcast %11 : f32 to vector<8x128xf32>
    %50 = arith.mulf %49, %48 : vector<8x128xf32>
    %51 = vector.broadcast %10 : f32 to vector<8x128xf32>
    %52 = arith.addf %51, %50 : vector<8x128xf32>
    %53 = vector.broadcast %12 : f32 to vector<8x128xf32>
    %54 = arith.mulf %53, %14 : vector<8x128xf32>
    %55 = arith.addf %52, %54 : vector<8x128xf32>
    %56 = arith.mulf %27, %15 : vector<8x128xf32>
    %57 = arith.mulf %39, %47 : vector<8x128xf32>
    %58 = arith.addf %56, %57 : vector<8x128xf32>
    %59 = math.tanh %58 : vector<8x128xf32>
    %60 = vector.broadcast %9 : f32 to vector<8x128xf32>
    %61 = arith.mulf %60, %59 : vector<8x128xf32>
    %cst_9 = arith.constant 1.000000e+00 : f32
    %62 = vector.broadcast %cst_9 : f32 to vector<8x128xf32>
    %63 = arith.addf %62, %61 : vector<8x128xf32>
    %64 = arith.mulf %55, %63 : vector<8x128xf32>
    %c0_10 = arith.constant 0 : index
    %c0_11 = arith.constant 0 : index
    %65 = vector.load %arg5[%c0_10, %c0_11] : memref<8x128xf32, #tpu.memory_space<vmem>>, vector<8x128xf32>
    tpu.vector_store %arg5[%c0_10, %c0_11], %64 {strides = array<i32>} : memref<8x128xf32, #tpu.memory_space<vmem>>, vector<8x128xf32>,
    %c0_12 = arith.constant 0 : index
    %c0_13 = arith.constant 0 : index
    %66 = vector.load %arg6[%c0_12, %c0_13] : memref<8x128xf32, #tpu.memory_space<vmem>>, vector<8x128xf32>
    tpu.vector_store %arg6[%c0_12, %c0_13], %58 {strides = array<i32>} : memref<8x128xf32, #tpu.memory_space<vmem>>, vector<8x128xf32>,
    return
  }
  func.func @transform_0(%arg0: i32) -> i32 {
    %c0_i32 = arith.constant 0 : i32
    %c0_i32_0 = arith.constant 0 : i32
    return %c0_i32 : i32
  }
  func.func @transform_1(%arg0: i32) -> (i32, i32) {
    %c0_i32 = arith.constant 0 : i32
    %c0_i32_0 = arith.constant 0 : i32
    return %arg0, %c0_i32 : i32, i32
  }
  func.func @transform_2(%arg0: i32) -> (i32, i32) {
    %c0_i32 = arith.constant 0 : i32
    %c0_i32_0 = arith.constant 0 : i32
    return %arg0, %c0_i32 : i32, i32
  }
  func.func @transform_3(%arg0: i32) -> (i32, i32) {
    %c0_i32 = arith.constant 0 : i32
    %c0_i32_0 = arith.constant 0 : i32
    return %arg0, %c0_i32 : i32, i32
  }
  func.func @transform_4(%arg0: i32) -> (i32, i32) {
    %c0_i32 = arith.constant 0 : i32
    %c0_i32_0 = arith.constant 0 : i32
    return %arg0, %c0_i32 : i32, i32
  }
  func.func @transform_5(%arg0: i32) -> (i32, i32) {
    %c0_i32 = arith.constant 0 : i32
    %c0_i32_0 = arith.constant 0 : i32
    return %arg0, %c0_i32 : i32, i32
  }
}

</mosaic_0001>

<llo_original>
// kernel: garch_lstm_cell.1
$region0: #{garch_lstm_cell.1}
  #allocation0 [shape = 'u32[]', space=smem, size = 0x4, offset = 0x4, fixed_abs, tag = 'smem constant byte address 0x4 - core index']
  #allocation1 [shape = 'u32[144,128]{1,0:T(1,128)}', space=vmem, size = 0x12000, scoped, tag = 'internal scratch']
  %s0 = inlined_call_operand.vmem [shape: f32[16], index: 0, kind: input, shape index: {}]
  %s1 = inlined_call_operand.vmem [shape: f32[8,128], index: 1, kind: input, shape index: {}]
  %s2 = inlined_call_operand.vmem [shape: f32[8,128], index: 2, kind: input, shape index: {}, may-alias: {2,4}]
  %s3 = inlined_call_operand.vmem [shape: f32[8,128], index: 3, kind: input, shape index: {}, may-alias: {3,5}]
  %s4 = inlined_call_operand.vmem [shape: f32[8,128], index: 4, kind: output, shape index: {0}, may-alias: {2,4}]
  %s5 = inlined_call_operand.vmem [shape: f32[8,128], index: 5, kind: output, shape index: {1}, may-alias: {3,5}]
  %6 = xla_tuple %s4, %s5
  %s7 = sld [smem:[#allocation0]]
  $region38: #{garch_lstm_cell.1} parent=0
    _
  %s9 = ssub.s32 1, %s7
  %s10 = scalar_select 0, %s9, %s7
  $region1: #{garch_lstm_cell.1} parent=0
    #allocation2 [shape = 'u8[512]{0}', space=smem, size = 0x200, scoped, tag = 'input window, operand 0, single buffered']
    #allocation3 [shape = 's32[1]{0}', space=sflag, size = 0x4, scoped, tag = 'scoped memory for garch_lstm_cell.1']
    %11 = vsyncpa [#allocation3], 0
    // Predicated region
    $region2: #{garch_lstm_cell.1} parent=1 // pred_check
      _
    $region3: #{garch_lstm_cell.1} parent=1 // pred_check_branch
      %13 = sbr.rel (0) target = $region5
    $region4: #{garch_lstm_cell.1} parent=1 // pred_region
      %s15 = ssub.s32 16, 16
      %16 = vsyncadd [#allocation3], %s15
      %s18 = sshll.u32 %s0, 4
      %s19 = int_to_ptr.vmem [resolvable:$true] %s18
      %21 = dma.vmem_to_smem %s19, 16, [#allocation2], [#allocation3]
    $region5: #{garch_lstm_cell.1} parent=1 // pred_fallthru
      _
    // Predicated region
    $region6: #{garch_lstm_cell.1} parent=1 // pred_check
      _
    $region7: #{garch_lstm_cell.1} parent=1 // pred_check_branch
      %23 = sbr.rel (0) target = $region9
    $region8: #{garch_lstm_cell.1} parent=1 // pred_region
      _
    $region9: #{garch_lstm_cell.1} parent=1 // pred_fallthru
      _
    // Predicated region
    $region10: #{garch_lstm_cell.1} parent=1 // pred_check
      _
    $region11: #{garch_lstm_cell.1} parent=1 // pred_check_branch
      %25 = sbr.rel (0) target = $region13
    $region12: #{garch_lstm_cell.1} parent=1 // pred_region
      _
    $region13: #{garch_lstm_cell.1} parent=1 // pred_fallthru
      _
    // Predicated region
    $region14: #{garch_lstm_cell.1} parent=1 // pred_check
      _
    $region15: #{garch_lstm_cell.1} parent=1 // pred_check_branch
      %27 = sbr.rel (0) target = $region17
    $region16: #{garch_lstm_cell.1} parent=1 // pred_region
      _
    $region17: #{garch_lstm_cell.1} parent=1 // pred_fallthru
      _
    // Predicated region
    $region18: #{garch_lstm_cell.1} parent=1 // pred_check
      _
    $region19: #{garch_lstm_cell.1} parent=1 // pred_check_branch
      %29 = sbr.rel (0) target = $region21
    $region20: #{garch_lstm_cell.1} parent=1 // pred_region
      %30 = dma.done [#allocation3], 16
    $region21: #{garch_lstm_cell.1} parent=1 // pred_fallthru
      _
    %31 = sfence
    %s32 = sld [smem:[#allocation2]]
    %s33 = sld [smem:[#allocation2 + $0x1]]
    %s34 = sld [smem:[#allocation2 + $0x2]]
    %s35 = sld [smem:[#allocation2 + $0x3]]
    %s36 = sld [smem:[#allocation2 + $0x4]]
    %s37 = sld [smem:[#allocation2 + $0x5]]
    %s38 = sld [smem:[#allocation2 + $0x6]]
    %s39 = sld [smem:[#allocation2 + $0x7]]
    %s40 = sld [smem:[#allocation2 + $0x8]]
    %s41 = sld [smem:[#allocation2 + $0x9]]
    %s42 = sld [smem:[#allocation2 + $0xa]]
    %s43 = sld [smem:[#allocation2 + $0xb]]
    %s44 = sld [smem:[#allocation2 + $0xc]]
    %v45 = vld [vmem:[%s1] sm:$0xff]
    %v46 = vld [vmem:[%s2] sm:$0xff]
    %v47 = vld [vmem:[%s3] sm:$0xff]
    %v48 = vstv %s32
    %v49 = vmul.f32 %v48, %v45
    %v50 = vstv %s33
    %v51 = vmul.f32 %v50, %v47
    %v52 = vadd.f32 %v49, %v51
    %v53 = vstv %s34
    %v54 = vadd.f32 %v52, %v53
    %v55 = vtanh.pop %v54
    %v56 = vmul.f32 %v55, 0.5
    %v57 = vadd.f32 %v56, 0.5
    %v58 = vstv %s35
    %v59 = vmul.f32 %v58, %v45
    %v60 = vstv %s36
    %v61 = vmul.f32 %v60, %v47
    %v62 = vadd.f32 %v59, %v61
    %v63 = vstv %s37
    %v64 = vadd.f32 %v62, %v63
    %v65 = vtanh.pop %v64
    %v66 = vmul.f32 %v65, 0.5
    %v67 = vadd.f32 %v66, 0.5
    %v68 = vstv %s38
    %v69 = vmul.f32 %v68, %v45
    %v70 = vstv %s39
    %v71 = vmul.f32 %v70, %v47
    %v72 = vadd.f32 %v69, %v71
    %v73 = vstv %s40
    %v74 = vadd.f32 %v72, %v73
    %v75 = vtanh.pop %v74
    %v76 = vmul.f32 %v45, %v45
    %v77 = vstv %s43
    %v78 = vmul.f32 %v77, %v76
    %v79 = vstv %s42
    %v80 = vadd.f32 %v79, %v78
    %v81 = vstv %s44
    %v82 = vmul.f32 %v81, %v46
    %v83 = vadd.f32 %v80, %v82
    %v84 = vmul.f32 %v57, %v47
    %v85 = vmul.f32 %v67, %v75
    %v86 = vadd.f32 %v84, %v85
    %v87 = vtanh.pop %v86
    %v88 = vstv %s41
    %v89 = vmul.f32 %v88, %v87
    %v90 = vadd.f32 %v89, 1.0
    %v91 = vmul.f32 %v83, %v90
    %92 = vst [vmem:[%s4] sm:$0xff] %v91
    %93 = vst [vmem:[%s5] sm:$0xff] %v86
    // Predicated region
    $region22: #{garch_lstm_cell.1} parent=1 // pred_check
      _
    $region23: #{garch_lstm_cell.1} parent=1 // pred_check_branch
      %95 = sbr.rel (0) target = $region25
    $region24: #{garch_lstm_cell.1} parent=1 // pred_region
      _
    $region25: #{garch_lstm_cell.1} parent=1 // pred_fallthru
      _
    // Predicated region
    $region26: #{garch_lstm_cell.1} parent=1 // pred_check
      _
    $region27: #{garch_lstm_cell.1} parent=1 // pred_check_branch
      %97 = sbr.rel (0) target = $region29
    $region28: #{garch_lstm_cell.1} parent=1 // pred_region
      _
    $region29: #{garch_lstm_cell.1} parent=1 // pred_fallthru
      _
    // Predicated region
    $region30: #{garch_lstm_cell.1} parent=1 // pred_check
      _
    $region31: #{garch_lstm_cell.1} parent=1 // pred_check_branch
      %99 = sbr.rel (0) target = $region33
    $region32: #{garch_lstm_cell.1} parent=1 // pred_region
      _
    $region33: #{garch_lstm_cell.1} parent=1 // pred_fallthru
      _
    // Predicated region
    $region34: #{garch_lstm_cell.1} parent=1 // pred_check
      _
    $region35: #{garch_lstm_cell.1} parent=1 // pred_check_branch
      %101 = sbr.rel (0) target = $region37
    $region36: #{garch_lstm_cell.1} parent=1 // pred_region
      _
    $region37: #{garch_lstm_cell.1} parent=1 // pred_fallthru
      _
    %102 = vsyncpa [#allocation3], 1

</llo_original>
